<compile_context>
chip_gen: v5e
topology: v5e:2x2
jax: 0.10.0
libtpu: 0.0.40
codegen_flags: <defaults>
</compile_context>

<pallas_src>
import functools

import jax
import jax.numpy as jnp
import numpy as np
from jax.experimental import pallas as pl
from jax.experimental.pallas import tpu as pltpu


def _pick_tile(n, cap, quantum):
    """Largest t <= min(n, cap) with n % t == 0 (assumes quantum | n and quantum | cap)."""
    t = min(n, cap)
    while n % t:
        t -= quantum
    return t


# --------------------------------------------------------------------------
# Kernels 1a/1b: "use_median" texture rewrite (two-pass, tiled)
#   diff = sum_c |tex_c - default_c| ;  default pixel := diff < 0.1
#   median_color_c = mean of tex_c over non-default pixels
#   tex_c[default pixels] = median_color_c
# Texture is reshaped to (3, P, 128) with P = R*R/128 (lane+sublane dense).
# --------------------------------------------------------------------------
def _median_stats_kernel(default_ref, tex_ref, stats_ref):
    # default_ref: SMEM (3,) ; tex_ref: VMEM (3, pt, 128)
    # stats_ref:   VMEM (1, 4, 128) resident accumulator per split
    #              rows 0..2 = per-lane channel sums, row 3 = keep count
    j = pl.program_id(1)
    t0 = tex_ref[0]
    t1 = tex_ref[1]
    t2 = tex_ref[2]
    diff = (jnp.abs(t0 - default_ref[0]) + jnp.abs(t1 - default_ref[1])
            + jnp.abs(t2 - default_ref[2]))
    keep = (diff >= 0.1).astype(jnp.float32)        # 1.0 where pixel is NOT default
    p0 = jnp.sum(t0 * keep, axis=0, keepdims=True)  # (1, 128) sublane reduce
    p1 = jnp.sum(t1 * keep, axis=0, keepdims=True)
    p2 = jnp.sum(t2 * keep, axis=0, keepdims=True)
    pc = jnp.sum(keep, axis=0, keepdims=True)
    part = jnp.concatenate([p0, p1, p2, pc], axis=0)  # (4, 128)

    @pl.when(j == 0)
    def _():
        stats_ref[0] = part

    @pl.when(j != 0)
    def _():
        stats_ref[0] += part


def _median_apply_kernel(default_ref, median_ref, tex_ref, out_ref):
    # default_ref / median_ref: SMEM (3,) scalars; tex/out: (3, pt, 128) tiles.
    d0, d1, d2 = default_ref[0], default_ref[1], default_ref[2]
    m0, m1, m2 = median_ref[0], median_ref[1], median_ref[2]
    t0 = tex_ref[0]
    t1 = tex_ref[1]
    t2 = tex_ref[2]
    diff = jnp.abs(t0 - d0) + jnp.abs(t1 - d1) + jnp.abs(t2 - d2)
    is_def = diff < 0.1
    out_ref[0] = jnp.where(is_def, m0, t0)
    out_ref[1] = jnp.where(is_def, m1, t1)
    out_ref[2] = jnp.where(is_def, m2, t2)


def median_texture_pallas(texture_img, default_color):
    _, C, R, R2 = texture_img.shape
    assert C == 3, "texture is RGB"
    n_pix = R * R2
    assert n_pix % 128 == 0, "texture pixel count must be a multiple of 128"
    P = n_pix // 128
    tex = texture_img.reshape(C, P, 128).astype(jnp.float32)
    # Row tile (lane width fixed at 128). Cap 1024 keeps the tile within v5e's
    # 16 MiB scoped default; raise to 2048 + vmem_limit_bytes on v6e if hot.
    pt = _pick_tile(P, 1024, 8) if P % 8 == 0 else P
    ntiles = P // pt
    # Split the reduction sweep over 2 resident accumulators so v7x's two
    # TensorCores can each take half the tiles (no-op on 1-TC chips).
    nsplit = 2 if (ntiles >= 2 and ntiles % 2 == 0) else 1
    tiles_per_split = ntiles // nsplit
    dflt = default_color.astype(jnp.float32)

    # Pass 1: accumulate per-lane channel sums and keep-count across tiles.
    stats = pl.pallas_call(
        _median_stats_kernel,
        out_shape=jax.ShapeDtypeStruct((nsplit, 4, 128), jnp.float32),
        grid_spec=pl.GridSpec(
            grid=(nsplit, tiles_per_split),
            in_specs=[
                pl.BlockSpec(memory_space=pltpu.MemorySpace.SMEM),
                pl.BlockSpec((C, pt, 128),
                             lambda c, j: (0, c * tiles_per_split + j, 0)),
            ],
            out_specs=pl.BlockSpec((1, 4, 128), lambda c, j: (c, 0, 0)),
        ),
        compiler_params=pltpu.CompilerParams(
            dimension_semantics=("parallel", "arbitrary")),
    )(dflt, tex)

    # Tiny finalize (done once, outside): collapse splits + lanes to 3 means.
    stats_sum = jnp.sum(stats, axis=0)                       # (4, 128)
    ch_sums = jnp.sum(stats_sum[:3], axis=1)                 # (3,)
    cnt = jnp.maximum(jnp.sum(stats_sum[3]), 1.0)            # guard: all-default
    medians = (ch_sums / cnt).astype(jnp.float32)            # (3,)

    # Pass 2: rewrite default pixels with the masked-mean color, tile by tile.
    out = pl.pallas_call(
        _median_apply_kernel,
        out_shape=jax.ShapeDtypeStruct((C, P, 128), jnp.float32),
        grid_spec=pl.GridSpec(
            grid=(ntiles,),
            in_specs=[
                pl.BlockSpec(memory_space=pltpu.MemorySpace.SMEM),   # default (3,)
                pl.BlockSpec(memory_space=pltpu.MemorySpace.SMEM),   # medians (3,)
                pl.BlockSpec((C, pt, 128), lambda i: (0, i, 0)),
            ],
            out_specs=pl.BlockSpec((C, pt, 128), lambda i: (0, i, 0)),
        ),
        compiler_params=pltpu.CompilerParams(
            dimension_semantics=("parallel",)),
    )(dflt, medians, tex)
    return out.reshape(texture_img.shape)


# --------------------------------------------------------------------------
# Kernel 2: composite + clamp (lane-dense, mask read once per tile)
#   pred_map = bg + mask*(feat - bg)
#   optionally clamp pred_map / foreground to [0,1]
# The constant background image is NOT written here (pure HBM traffic); it is
# reconstructed lazily in render().
# --------------------------------------------------------------------------
def _composite_kernel(bg_ref, feat_ref, mask_ref, map_ref, fg_ref, *, clamp, C):
    feat = feat_ref[0]                               # (C, tw)
    m = mask_ref[0].astype(jnp.float32)              # (1, tw) (mask may be bf16/u8)
    rows = []
    for c in range(C):                               # C == 3, static unroll
        bg_c = bg_ref[c]                             # SMEM scalar -> vreg splat
        rows.append(bg_c + m * (feat[c:c + 1] - bg_c))
    pred_map = jnp.concatenate(rows, axis=0)         # (C, tw)
    if clamp:
        map_ref[0] = jnp.clip(pred_map, 0.0, 1.0).astype(feat.dtype)
        fg_ref[0] = jnp.clip(feat, 0.0, 1.0)
    else:
        map_ref[0] = pred_map.astype(feat.dtype)
        fg_ref[0] = feat


def composite_pallas(pred_features, mask, background_color, clamp=True):
    B, C, H, W = pred_features.shape
    assert mask.shape == (B, 1, H, W)
    HW = H * W
    assert HW % 128 == 0, "H*W must be a multiple of 128"
    tw = _pick_tile(HW, 131072, 128)
    # v7x megacore: keep at least 2 grid tiles so both TensorCores get work.
    while B * (HW // tw) < 2 and tw % 256 == 0:
        tw //= 2
    n_hw = HW // tw

    feat2 = pred_features.reshape(B, C, HW)
    mask2 = mask.reshape(B, 1, HW)                    # kept in its native dtype
    bg = background_color.reshape(C).astype(jnp.float32)

    fbytes = jnp.dtype(pred_features.dtype).itemsize
    mbytes = jnp.dtype(mask.dtype).itemsize
    step_bytes = C * tw * fbytes * 3 + tw * mbytes    # feat in + 2 outs + mask
    vmem_limit = min(max(2 * step_bytes + (6 << 20), 16 << 20), 60 << 20)

    kernel = functools.partial(_composite_kernel, clamp=clamp, C=C)
    img_spec = pl.BlockSpec((1, C, tw), lambda b, j: (b, 0, j))
    pred_map, fg = pl.pallas_call(
        kernel,
        out_shape=(
            jax.ShapeDtypeStruct((B, C, HW), pred_features.dtype),
            jax.ShapeDtypeStruct((B, C, HW), pred_features.dtype),
        ),
        grid_spec=pl.GridSpec(
            grid=(B, n_hw),
            in_specs=[
                pl.BlockSpec(memory_space=pltpu.MemorySpace.SMEM),   # background (3,)
                img_spec,                                            # features
                pl.BlockSpec((1, 1, tw), lambda b, j: (b, 0, j)),    # mask
            ],
            out_specs=(img_spec, img_spec),
        ),
        compiler_params=pltpu.CompilerParams(
            dimension_semantics=("parallel", "parallel"),
            vmem_limit_bytes=int(vmem_limit)),
    )(bg, feat2, mask2)

    shape = (B, C, H, W)
    return pred_map.reshape(shape), fg.reshape(shape)


# --------------------------------------------------------------------------
# Kernels 3a-3d: spectral augmentation + normalize_vertices, tiled over Nv.
#   basis /= (max - min) per eigenvector
#   recon = coeffs @ basis           -> sum_k (coeff_k/rng_k) * basis[k, :]
#   deformed = v + 0.25 * recon * v / ||v||
#   normalize_vertices(deformed, mesh_scale, dy)
# Vertices are (3, Nv) end-to-end (lane-dense, no transposes); the K=20
# contraction stays on the VPU/XLU.
# --------------------------------------------------------------------------
def _basis_range_kernel(basis_ref, bmin_ref, bmax_ref):
    i = pl.program_id(0)
    b = basis_ref[...]                                   # (K, tn)
    tmin = jnp.min(b, axis=1, keepdims=True)             # (K, 1)
    tmax = jnp.max(b, axis=1, keepdims=True)

    @pl.when(i == 0)
    def _():
        bmin_ref[...] = tmin
        bmax_ref[...] = tmax

    @pl.when(i != 0)
    def _():
        bmin_ref[...] = jnp.minimum(bmin_ref[...], tmin)
        bmax_ref[...] = jnp.maximum(bmax_ref[...], tmax)


def _deform_kernel(crng_ref, basis_ref, verts_ref, def_ref, vsum_ref):
    i = pl.program_id(0)
    recon = jnp.sum(basis_ref[...] * crng_ref[...], axis=0, keepdims=True)  # (1, tn)
    v = verts_ref[...]                                                      # (3, tn)
    inv_norm = jax.lax.rsqrt(jnp.sum(v * v, axis=0, keepdims=True) + 1e-20)
    d = v + (0.25 * recon) * (v * inv_norm)
    def_ref[...] = d
    part = jnp.sum(d, axis=1, keepdims=True)                                # (3, 1)

    @pl.when(i == 0)
    def _():
        vsum_ref[...] = part

    @pl.when(i != 0)
    def _():
        vsum_ref[...] += part


def _maxnorm_kernel(mean_ref, def_ref, maxsq_ref):
    i = pl.program_id(0)
    d = def_ref[...] - mean_ref[...]                                        # (3, tn)
    msq = jnp.max(jnp.sum(d * d, axis=0, keepdims=True), axis=1,
                  keepdims=True)                                            # (1, 1)

    @pl.when(i == 0)
    def _():
        maxsq_ref[...] = msq

    @pl.when(i != 0)
    def _():
        maxsq_ref[...] = jnp.maximum(maxsq_ref[...], msq)


def _spectral_finalize_kernel(mean_ref, maxsq_ref, def_ref, out_ref, *,
                              mesh_scale, dy):
    scale = mesh_scale * jax.lax.rsqrt(maxsq_ref[...])                      # (1, 1)
    d = (def_ref[...] - mean_ref[...]) * scale
    row = jax.lax.broadcasted_iota(jnp.int32, d.shape, 0)
    out_ref[...] = (d + jnp.where(row == 1, dy, 0.0)).astype(out_ref.dtype)


def spectral_augment_pallas(vertices_3n, basis_functions, coeffs, mesh_scale, dy):
    # vertices_3n: (3, Nv) ; basis_functions: (K, Nv) ; coeffs: (K,)
    K, Nv = basis_functions.shape
    assert vertices_3n.shape == (3, Nv)
    # TODO(synk): pad + mask ragged Nv (not a multiple of 128) if needed.
    assert Nv % 128 == 0, "Nv must be a multiple of 128"
    tn = _pick_tile(Nv, 16384, 128)
    ntiles = Nv // tn

    basis = basis_functions.astype(jnp.float32)
    verts = vertices_3n.astype(jnp.float32)

    # Pass 1: global per-eigenvector basis min / max.
    bmin, bmax = pl.pallas_call(
        _basis_range_kernel,
        out_shape=(jax.ShapeDtypeStruct((K, 1), jnp.float32),
                   jax.ShapeDtypeStruct((K, 1), jnp.float32)),
        grid_spec=pl.GridSpec(
            grid=(ntiles,),
            in_specs=[pl.BlockSpec((K, tn), lambda i: (0, i))],
            out_specs=(pl.BlockSpec((K, 1), lambda i: (0, 0)),
                       pl.BlockSpec((K, 1), lambda i: (0, 0))),
        ),
        compiler_params=pltpu.CompilerParams(
            dimension_semantics=("arbitrary",)),
    )(basis)

    crng = coeffs.reshape(K, 1).astype(jnp.float32) / (bmax - bmin)   # (K, 1)

    # Pass 2: deformed vertices + running sum (for the mean).
    deformed, vsum = pl.pallas_call(
        _deform_kernel,
        out_shape=(jax.ShapeDtypeStruct((3, Nv), jnp.float32),
                   jax.ShapeDtypeStruct((3, 1), jnp.float32)),
        grid_spec=pl.GridSpec(
            grid=(ntiles,),
            in_specs=[
                pl.BlockSpec((K, 1), lambda i: (0, 0)),
                pl.BlockSpec((K, tn), lambda i: (0, i)),
                pl.BlockSpec((3, tn), lambda i: (0, i)),
            ],
            out_specs=(pl.BlockSpec((3, tn), lambda i: (0, i)),
                       pl.BlockSpec((3, 1), lambda i: (0, 0))),
        ),
        compiler_params=pltpu.CompilerParams(
            dimension_semantics=("arbitrary",)),
    )(crng, basis, verts)

    mean = vsum * (1.0 / float(Nv))                                    # (3, 1)

    # Pass 3: global max ||deformed - mean||^2.
    maxsq = pl.pallas_call(
        _maxnorm_kernel,
        out_shape=jax.ShapeDtypeStruct((1, 1), jnp.float32),
        grid_spec=pl.GridSpec(
            grid=(ntiles,),
            in_specs=[
                pl.BlockSpec((3, 1), lambda i: (0, 0)),
                pl.BlockSpec((3, tn), lambda i: (0, i)),
            ],
            out_specs=pl.BlockSpec((1, 1), lambda i: (0, 0)),
        ),
        compiler_params=pltpu.CompilerParams(
            dimension_semantics=("arbitrary",)),
    )(mean, deformed)

    # Pass 4: center, scale to mesh_scale, add dy on the y row.
    kernel = functools.partial(_spectral_finalize_kernel,
                               mesh_scale=float(mesh_scale), dy=float(dy))
    out = pl.pallas_call(
        kernel,
        out_shape=jax.ShapeDtypeStruct((3, Nv), jnp.float32),
        grid_spec=pl.GridSpec(
            grid=(ntiles,),
            in_specs=[
                pl.BlockSpec((3, 1), lambda i: (0, 0)),
                pl.BlockSpec((1, 1), lambda i: (0, 0)),
                pl.BlockSpec((3, tn), lambda i: (0, i)),
            ],
            out_specs=pl.BlockSpec((3, tn), lambda i: (0, i)),
        ),
        compiler_params=pltpu.CompilerParams(
            dimension_semantics=("parallel",)),
    )(mean, maxsq, deformed)
    return out


# --------------------------------------------------------------------------
# Wrapper mirroring TexturedMeshModel's parameter init + render() compute.
# --------------------------------------------------------------------------
class TexturedMeshModelPallas:
    def __init__(self, texture_resolution=64, n_env_faces=32,
                 mesh_scale=0.6, dy=0.25, key=jax.random.PRNGKey(0)):
        self.num_features = 3
        self.n_eigen_values = 20
        self.mesh_scale = mesh_scale
        self.dy = dy
        self.texture_resolution = texture_resolution
        self.default_color = jnp.array([0.8, 0.1, 0.8], jnp.float32)

        k1, k2 = jax.random.split(key, 2)
        # background_sphere_colors: (1, n_env_faces, 3, num_features)
        base = jax.random.uniform(k1, (1, 3), jnp.float32)
        self.background_sphere_colors = (
            base[:, None, None, :] * 0.8
            + 0.2 * jax.random.normal(k2, (1, n_env_faces, 3,
                                           self.num_features), jnp.float32))
        # texture_img: (1, 3, R, R) filled with default color (no initial texture)
        self.texture_img = (jnp.ones(
            (1, 3, texture_resolution, texture_resolution), jnp.float32)
            * self.default_color.reshape(1, 3, 1, 1))
        self.meta_texture_img = jnp.zeros_like(self.texture_img)

    def render(self, pred_features, mask, background,
               use_meta_texture=False, use_median=False):
        # TODO(synk): kaolin rasterization (render_single_view_texture) has no
        # Pallas equivalent; pred_features/mask/depth/normals come from it and
        # are taken as inputs here.
        texture_img = self.meta_texture_img if use_meta_texture else self.texture_img
        if use_median:
            texture_img = median_texture_pallas(texture_img, self.default_color)
        pred_map, foreground = composite_pallas(
            pred_features, mask, background, clamp=not use_meta_texture)
        B, C, H, W = pred_features.shape
        # Constant-per-channel background image: built lazily outside the
        # kernel instead of being written from it.
        pred_back = jnp.broadcast_to(
            background.reshape(1, C, 1, 1).astype(pred_features.dtype),
            (B, C, H, W))
        return {"image": pred_map, "mask": mask, "background": pred_back,
                "foreground": foreground, "texture_map": texture_img}

    def spectral_augmentations(self, vertices_3n, basis_functions, coeffs):
        # TODO(synk): cotan-Laplacian eigsh and the random basis choice run on
        # host; the eigen-basis and coefficient vector are inputs here.
        # Vertices are carried as (3, Nv) to keep stores lane-dense and avoid
        # wrapper-side transposes.
        return spectral_augment_pallas(vertices_3n, basis_functions, coeffs,
                                       self.mesh_scale, self.dy)


# --------------------------------------------------------------------------
# Main: deterministic inputs, run kernels, compare against numpy references.
# --------------------------------------------------------------------------
if __name__ == "__main__":
    key = jax.random.PRNGKey(0)
    k1, k2, k3, k4, k5 = jax.random.split(key, 5)

    B, C, H, W = 2, 3, 16, 16
    R = 64
    Nv, K = 256, 20

    model = TexturedMeshModelPallas(texture_resolution=R, key=k5)

    pred_features = jax.random.uniform(k1, (B, C, H, W), jnp.float32, -0.2, 1.2)
    # Mask as produced by the rasterizer is binary; carry it narrow (bf16) to
    # shrink the composite read stream — converted to f32 in-kernel.
    mask = (jax.random.uniform(k2, (B, 1, H, W), jnp.float32) > 0.5
            ).astype(jnp.bfloat16)
    background = jnp.array([0.1, 0.2, 0.3], jnp.float32)

    # Perturb part of the texture so both default and non-default pixels exist.
    noise = jax.random.uniform(k3, model.texture_img.shape, jnp.float32)
    model.texture_img = jnp.where(noise > 0.7, noise, model.texture_img)

    out = model.render(pred_features, mask, background, use_median=True)
    jax.block_until_ready(out["image"])

    # ---- reference: composite + clamp ----
    feat_np = np.asarray(pred_features)
    mask_np = np.asarray(mask.astype(jnp.float32))
    bg_np = np.asarray(background)
    pred_back_ref = np.ones_like(feat_np) * bg_np.reshape(1, 3, 1, 1)
    pred_map_ref = np.clip(pred_back_ref * (1 - mask_np) + feat_np * mask_np, 0, 1)
    fg_ref = np.clip(feat_np, 0, 1)
    np.testing.assert_allclose(np.asarray(out["image"]), pred_map_ref,
                               rtol=1e-5, atol=1e-5)
    np.testing.assert_allclose(np.asarray(out["foreground"]), fg_ref,
                               rtol=1e-5, atol=1e-5)
    np.testing.assert_allclose(np.asarray(out["background"]), pred_back_ref,
                               rtol=1e-6, atol=1e-6)

    # ---- reference: median texture rewrite ----
    tex_np = np.asarray(model.texture_img)
    dflt = np.asarray(model.default_color)
    diff = np.abs(tex_np - dflt.reshape(1, 3, 1, 1)).sum(axis=1)     # (1, R, R)
    default_mask = (diff < 0.1).astype(np.float32)
    flat = tex_np[0].reshape(3, -1)
    median = flat[:, default_mask.flatten() == 0].mean(axis=1)
    tex_ref = tex_np.copy().reshape(3, -1)
    tex_ref[:, default_mask.flatten() == 1] = median.reshape(-1, 1)
    tex_ref = tex_ref.reshape(1, 3, R, R)
    np.testing.assert_allclose(np.asarray(out["texture_map"]), tex_ref,
                               rtol=1e-5, atol=1e-5)

    # ---- spectral augmentation ----
    verts3 = (jax.random.normal(k4, (3, Nv), jnp.float32)
              + jnp.array([0.5, -0.2, 0.1], jnp.float32).reshape(3, 1))
    t = jnp.arange(Nv, dtype=jnp.float32)
    basis = jnp.stack([jnp.sin((i + 1) * 0.05 * t) + 0.01 * (i + 1)
                       for i in range(K)])                           # (K, Nv)
    coeffs = jnp.zeros((K,), jnp.float32).at[3].set(1.0).at[13].set(-1.0)

    deformed3 = model.spectral_augmentations(verts3, basis, coeffs)  # (3, Nv)
    jax.block_until_ready(deformed3)

    v_np = np.asarray(verts3, dtype=np.float64).T                    # (Nv, 3)
    b_np = np.asarray(basis, dtype=np.float64)
    c_np = np.asarray(coeffs, dtype=np.float64)
    b_np = b_np / (b_np.max(-1)[:, None] - b_np.min(-1)[:, None])
    recon = c_np @ b_np
    dirs = v_np / np.linalg.norm(v_np, axis=1)[:, None]
    dref = v_np + 0.25 * recon[:, None] * dirs
    dref = dref - dref.mean(axis=0)[None, :]
    dref = dref / np.linalg.norm(dref, axis=1).max()
    dref = dref * model.mesh_scale
    dref[:, 1] += model.dy
    np.testing.assert_allclose(np.asarray(deformed3).T, dref,
                               rtol=1e-4, atol=1e-4)

    print("KERNEL_OK")
</pallas_src>

<mosaic_0001>
module attributes {stable_mosaic.version = 11 : i64} {
  func.func @_median_stats_kernel(%arg0: i32, %arg1: i32, %arg2: memref<3xf32, #tpu.memory_space<smem>>, %arg3: memref<3x32x128xf32, #tpu.memory_space<vmem>>, %arg4: memref<1x4x128xf32, #tpu.memory_space<vmem>>) attributes {dimension_semantics = [#tpu.dimension_semantics<parallel>, #tpu.dimension_semantics<arbitrary>], iteration_bounds = array<i64: 1, 1>, scalar_prefetch = 0 : i64, scratch_operands = 0 : i64, tpu.core_type = #tpu.core_type<tc>, window_params = [{transform_indices = @transform_0, window_bounds = array<i64: 3>}, {transform_indices = @transform_1, window_bounds = array<i64: 3, 32, 128>}, {transform_indices = @transform_2, window_bounds = array<i64: 1, 4, 128>}]} {
    %c0 = arith.constant 0 : index
    %c0_0 = arith.constant 0 : index
    %c0_1 = arith.constant 0 : index
    %0 = vector.load %arg3[%c0, %c0_0, %c0_1] : memref<3x32x128xf32, #tpu.memory_space<vmem>>, vector<1x32x128xf32>
    %1 = vector.shape_cast %0 : vector<1x32x128xf32> to vector<32x128xf32>
    %c1 = arith.constant 1 : index
    %c0_2 = arith.constant 0 : index
    %c0_3 = arith.constant 0 : index
    %2 = vector.load %arg3[%c1, %c0_2, %c0_3] : memref<3x32x128xf32, #tpu.memory_space<vmem>>, vector<1x32x128xf32>
    %3 = vector.shape_cast %2 : vector<1x32x128xf32> to vector<32x128xf32>
    %c2 = arith.constant 2 : index
    %c0_4 = arith.constant 0 : index
    %c0_5 = arith.constant 0 : index
    %4 = vector.load %arg3[%c2, %c0_4, %c0_5] : memref<3x32x128xf32, #tpu.memory_space<vmem>>, vector<1x32x128xf32>
    %5 = vector.shape_cast %4 : vector<1x32x128xf32> to vector<32x128xf32>
    %c0_6 = arith.constant 0 : index
    %6 = memref.load %arg2[%c0_6] : memref<3xf32, #tpu.memory_space<smem>>
    %7 = vector.broadcast %6 : f32 to vector<32x128xf32>
    %8 = arith.subf %1, %7 : vector<32x128xf32>
    %9 = math.absf %8 : vector<32x128xf32>
    %c1_7 = arith.constant 1 : index
    %10 = memref.load %arg2[%c1_7] : memref<3xf32, #tpu.memory_space<smem>>
    %11 = vector.broadcast %10 : f32 to vector<32x128xf32>
    %12 = arith.subf %3, %11 : vector<32x128xf32>
    %13 = math.absf %12 : vector<32x128xf32>
    %14 = arith.addf %9, %13 : vector<32x128xf32>
    %c2_8 = arith.constant 2 : index
    %15 = memref.load %arg2[%c2_8] : memref<3xf32, #tpu.memory_space<smem>>
    %16 = vector.broadcast %15 : f32 to vector<32x128xf32>
    %17 = arith.subf %5, %16 : vector<32x128xf32>
    %18 = math.absf %17 : vector<32x128xf32>
    %19 = arith.addf %14, %18 : vector<32x128xf32>
    %cst = arith.constant 1.000000e-01 : f32
    %20 = vector.broadcast %cst : f32 to vector<32x128xf32>
    %21 = arith.cmpf oge, %19, %20 : vector<32x128xf32>
    %22 = arith.extui %21 : vector<32x128xi1> to vector<32x128xi32>
    %23 = arith.sitofp %22 : vector<32x128xi32> to vector<32x128xf32>
    %24 = arith.mulf %1, %23 : vector<32x128xf32>
    %cst_9 = arith.constant dense<0.000000e+00> : vector<128xf32>
    %25 = vector.multi_reduction <add>, %24, %cst_9 [0] : vector<32x128xf32> to vector<128xf32>
    %26 = vector.shape_cast %25 : vector<128xf32> to vector<1x128xf32>
    %27 = arith.mulf %3, %23 : vector<32x128xf32>
    %cst_10 = arith.constant dense<0.000000e+00> : vector<128xf32>
    %28 = vector.multi_reduction <add>, %27, %cst_10 [0] : vector<32x128xf32> to vector<128xf32>
    %29 = vector.shape_cast %28 : vector<128xf32> to vector<1x128xf32>
    %30 = arith.mulf %5, %23 : vector<32x128xf32>
    %cst_11 = arith.constant dense<0.000000e+00> : vector<128xf32>
    %31 = vector.multi_reduction <add>, %30, %cst_11 [0] : vector<32x128xf32> to vector<128xf32>
    %32 = vector.shape_cast %31 : vector<128xf32> to vector<1x128xf32>
    %cst_12 = arith.constant dense<0.000000e+00> : vector<128xf32>
    %33 = vector.multi_reduction <add>, %23, %cst_12 [0] : vector<32x128xf32> to vector<128xf32>
    %34 = vector.shape_cast %33 : vector<128xf32> to vector<1x128xf32>
    %35 = tpu.concatenate %26, %29, %32, %34 in 0 : vector<1x128xf32>, vector<1x128xf32>, vector<1x128xf32>, vector<1x128xf32> -> vector<4x128xf32>
    %c0_i32 = arith.constant 0 : i32
    %36 = arith.cmpi eq, %arg1, %c0_i32 : i32
    %37 = arith.extui %36 : i1 to i32
    %c0_i32_13 = arith.constant 0 : i32
    %38 = arith.cmpi ne, %37, %c0_i32_13 : i32
    scf.if %38 {
      %c0_16 = arith.constant 0 : index
      %c0_17 = arith.constant 0 : index
      %c0_18 = arith.constant 0 : index
      %42 = vector.load %arg4[%c0_16, %c0_17, %c0_18] : memref<1x4x128xf32, #tpu.memory_space<vmem>>, vector<1x4x128xf32>
      %43 = vector.shape_cast %42 : vector<1x4x128xf32> to vector<4x128xf32>
      %44 = vector.shape_cast %35 : vector<4x128xf32> to vector<1x4x128xf32>
      tpu.vector_store %arg4[%c0_16, %c0_17, %c0_18], %44 {strides = array<i32>} : memref<1x4x128xf32, #tpu.memory_space<vmem>>, vector<1x4x128xf32>,
    } else {
    }
    %c0_i32_14 = arith.constant 0 : i32
    %39 = arith.cmpi ne, %arg1, %c0_i32_14 : i32
    %40 = arith.extui %39 : i1 to i32
    %c0_i32_15 = arith.constant 0 : i32
    %41 = arith.cmpi ne, %40, %c0_i32_15 : i32
    scf.if %41 {
      %c0_16 = arith.constant 0 : index
      %c0_17 = arith.constant 0 : index
      %c0_18 = arith.constant 0 : index
      %42 = vector.load %arg4[%c0_16, %c0_17, %c0_18] : memref<1x4x128xf32, #tpu.memory_space<vmem>>, vector<1x4x128xf32>
      %43 = vector.shape_cast %42 : vector<1x4x128xf32> to vector<4x128xf32>
      %44 = arith.addf %43, %35 : vector<4x128xf32>
      %c0_19 = arith.constant 0 : index
      %c0_20 = arith.constant 0 : index
      %c0_21 = arith.constant 0 : index
      %45 = vector.load %arg4[%c0_19, %c0_20, %c0_21] : memref<1x4x128xf32, #tpu.memory_space<vmem>>, vector<1x4x128xf32>
      %46 = vector.shape_cast %45 : vector<1x4x128xf32> to vector<4x128xf32>
      %47 = vector.shape_cast %44 : vector<4x128xf32> to vector<1x4x128xf32>
      tpu.vector_store %arg4[%c0_19, %c0_20, %c0_21], %47 {strides = array<i32>} : memref<1x4x128xf32, #tpu.memory_space<vmem>>, vector<1x4x128xf32>,
    } else {
    }
    return
  }
  func.func @transform_0(%arg0: i32, %arg1: i32) -> i32 {
    %c0_i32 = arith.constant 0 : i32
    %c0_i32_0 = arith.constant 0 : i32
    return %c0_i32 : i32
  }
  func.func @transform_1(%arg0: i32, %arg1: i32) -> (i32, i32, i32) {
    %c1_i32 = arith.constant 1 : i32
    %0 = arith.muli %arg0, %c1_i32 : i32
    %1 = arith.addi %0, %arg1 : i32
    %c0_i32 = arith.constant 0 : i32
    %c0_i32_0 = arith.constant 0 : i32
    %c0_i32_1 = arith.constant 0 : i32
    return %c0_i32, %1, %c0_i32_0 : i32, i32, i32
  }
  func.func @transform_2(%arg0: i32, %arg1: i32) -> (i32, i32, i32) {
    %c0_i32 = arith.constant 0 : i32
    %c0_i32_0 = arith.constant 0 : i32
    %c0_i32_1 = arith.constant 0 : i32
    return %arg0, %c0_i32, %c0_i32_0 : i32, i32, i32
  }
}

</mosaic_0001>

<llo_original>
// kernel: tpu_custom_call.1
$region0: #{tpu_custom_call.1}
  #allocation0 [shape = 'u32[]', space=smem, size = 0x4, offset = 0x4, fixed_abs, tag = 'smem constant byte address 0x4 - core index']
  #allocation1 [shape = 'u32[72,128]{1,0:T(1,128)}', space=vmem, size = 0x9000, scoped, tag = 'internal scratch']
  %s0 = inlined_call_operand.hbm [shape: f32[3], index: 0, kind: input, shape index: {}]
  %s1 = inlined_call_operand.hbm [shape: f32[3,32,128], index: 1, kind: input, shape index: {}]
  %s2 = inlined_call_operand.hbm [shape: f32[1,4,128], index: 2, kind: output, shape index: {}]
  %s3 = sld [smem:[#allocation0]]
  $region34: #{tpu_custom_call.1} parent=0
    _
  %s5 = ssub.s32 1, %s3
  %s6 = scalar_select 0, %s5, %s3
  $region1: #{tpu_custom_call.1} parent=0
    #allocation2 [shape = 'u8[512]{0}', space=smem, size = 0x200, scoped, tag = 'input window, operand 0, single buffered']
    #allocation3 [shape = 's32[1]{0}', space=sflag, size = 0x4, scoped, tag = 'scoped memory for tpu_custom_call.1']
    #allocation4 [shape = 's32[1]{0}', space=sflag, size = 0x4, scoped, tag = 'scoped memory for tpu_custom_call.1']
    #allocation5 [shape = 's32[1]{0}', space=sflag, size = 0x4, scoped, tag = 'scoped memory for tpu_custom_call.1']
    #allocation6 [shape = 'u8[49152]{0}', space=vmem, size = 0xc000, scoped, tag = 'input window, operand 1, single buffered']
    #allocation7 [shape = 'u8[2048]{0}', space=vmem, size = 0x800, scoped, tag = 'output window, operand 0, single buffered']
    %7 = vsyncpa [#allocation5], 0
    %8 = vsyncpa [#allocation3], 0
    %9 = vsyncpa [#allocation4], 0
    // Predicated region
    $region2: #{tpu_custom_call.1} parent=1 // pred_check
      _
    $region3: #{tpu_custom_call.1} parent=1 // pred_check_branch
      %11 = sbr.rel (0) target = $region5
    $region4: #{tpu_custom_call.1} parent=1 // pred_region
      %13 = vsyncadd [#allocation5], 0
      %s15 = sshll.u32 %s0, 4
      %s16 = int_to_ptr.hbm [resolvable:$true] %s15
      %18 = dma.hbm_to_smem %s16, 16, [#allocation2], [#allocation5]
    $region5: #{tpu_custom_call.1} parent=1 // pred_fallthru
      _
    // Predicated region
    $region6: #{tpu_custom_call.1} parent=1 // pred_check
      _
    $region7: #{tpu_custom_call.1} parent=1 // pred_check_branch
      %20 = sbr.rel (0) target = $region9
    $region8: #{tpu_custom_call.1} parent=1 // pred_region
      %s21 = sadd.s32 0, 0
      %s22 = smul.u32 4, %s21
      %24 = vsyncadd [#allocation3], 0
      %s25 = smul.addr %s22, 8
      %s26 = scalar_lea.hbm %s1, %s25
      %s27 = sshll.u32 %s26, 4
      %s28 = int_to_ptr.hbm [resolvable:$true] %s27
      %s29 = sshll.u32 [#allocation6], 4
      %s30 = int_to_ptr.vmem [resolvable:$true] %s29
      %35 = dma.hbm_to_vmem [thread:$0]  %s28, 1536, %s30, [#allocation3], 128, 128, 8
    $region9: #{tpu_custom_call.1} parent=1 // pred_fallthru
      _
    // Predicated region
    $region10: #{tpu_custom_call.1} parent=1 // pred_check
      _
    $region11: #{tpu_custom_call.1} parent=1 // pred_check_branch
      %37 = sbr.rel (0) target = $region13
    $region12: #{tpu_custom_call.1} parent=1 // pred_region
      %39 = dma.done [#allocation5], 16
    $region13: #{tpu_custom_call.1} parent=1 // pred_fallthru
      _
    // Predicated region
    $region14: #{tpu_custom_call.1} parent=1 // pred_check
      _
    $region15: #{tpu_custom_call.1} parent=1 // pred_check_branch
      %41 = sbr.rel (0) target = $region17
    $region16: #{tpu_custom_call.1} parent=1 // pred_region
      %43 = dma.done [#allocation3], 1536
    $region17: #{tpu_custom_call.1} parent=1 // pred_fallthru
      _
    %44 = sfence
    %s45 = sadd.s32 0, 0
    %s46 = smul.u32 4, %s45
    %v47 = vld [vmem:[#allocation6] sm:$0xff]
    %v48 = vld [vmem:[#allocation6 + $0x8] sm:$0xff]
    %v49 = vld [vmem:[#allocation6 + $0x10] sm:$0xff]
    %v50 = vld [vmem:[#allocation6 + $0x18] sm:$0xff]
    %s51 = scalar_lea.vmem [#allocation6], 32
    %v52 = vld [vmem:[%s51] sm:$0xff]
    %v53 = vld [vmem:[%s51 + $0x8] sm:$0xff]
    %v54 = vld [vmem:[%s51 + $0x10] sm:$0xff]
    %v55 = vld [vmem:[%s51 + $0x18] sm:$0xff]
    %s56 = scalar_lea.vmem [#allocation6], 64
    %v57 = vld [vmem:[%s56] sm:$0xff]
    %v58 = vld [vmem:[%s56 + $0x8] sm:$0xff]
    %v59 = vld [vmem:[%s56 + $0x10] sm:$0xff]
    %v60 = vld [vmem:[%s56 + $0x18] sm:$0xff]
    %s61 = sld [smem:[#allocation2]]
    %v62 = vstv %s61
    %v63 = vsub.f32 %v47, %v62
    %v64 = vsub.f32 %v48, %v62
    %v65 = vsub.f32 %v49, %v62
    %v66 = vsub.f32 %v50, %v62
    %v67 = vand.u32 2147483647, %v63
    %v68 = vand.u32 2147483647, %v64
    %v69 = vand.u32 2147483647, %v65
    %v70 = vand.u32 2147483647, %v66
    %s71 = sld [smem:[#allocation2 + $0x1]]
    %v72 = vstv %s71
    %v73 = vsub.f32 %v52, %v72
    %v74 = vsub.f32 %v53, %v72
    %v75 = vsub.f32 %v54, %v72
    %v76 = vsub.f32 %v55, %v72
    %v77 = vand.u32 2147483647, %v73
    %v78 = vand.u32 2147483647, %v74
    %v79 = vand.u32 2147483647, %v75
    %v80 = vand.u32 2147483647, %v76
    %v81 = vadd.f32 %v67, %v77
    %v82 = vadd.f32 %v68, %v78
    %v83 = vadd.f32 %v69, %v79
    %v84 = vadd.f32 %v70, %v80
    %s85 = sld [smem:[#allocation2 + $0x2]]
    %v86 = vstv %s85
    %v87 = vsub.f32 %v57, %v86
    %v88 = vsub.f32 %v58, %v86
    %v89 = vsub.f32 %v59, %v86
    %v90 = vsub.f32 %v60, %v86
    %v91 = vand.u32 2147483647, %v87
    %v92 = vand.u32 2147483647, %v88
    %v93 = vand.u32 2147483647, %v89
    %v94 = vand.u32 2147483647, %v90
    %v95 = vadd.f32 %v81, %v91
    %v96 = vadd.f32 %v82, %v92
    %v97 = vadd.f32 %v83, %v93
    %v98 = vadd.f32 %v84, %v94
    %vm99 = vcmp.ge.f32.partialorder %v95, 0.1
    %vm100 = vcmp.ge.f32.partialorder %v96, 0.1
    %vm101 = vcmp.ge.f32.partialorder %v97, 0.1
    %vm102 = vcmp.ge.f32.partialorder %v98, 0.1
    %v103 = vsel %vm99, 1, 0
    %v104 = vsel %vm100, 1, 0
    %v105 = vsel %vm101, 1, 0
    %v106 = vsel %vm102, 1, 0
    %v107 = vcvt.s32.f32 %v103
    %v108 = vcvt.s32.f32 %v104
    %v109 = vcvt.s32.f32 %v105
    %v110 = vcvt.s32.f32 %v106
    %v111 = vmul.f32 %v47, %v107
    %v112 = vmul.f32 %v48, %v108
    %v113 = vmul.f32 %v49, %v109
    %v114 = vmul.f32 %v50, %v110
    %v115 = vadd.f32 %v111, %v112
    %v116 = vadd.f32 %v115, %v113
    %v117 = vadd.f32 %v116, %v114
    %v118 = vrot.slane %v117, 4
    %v119 = vadd.f32 %v117, %v118
    %v120 = vrot.slane %v119, 2
    %v121 = vadd.f32 %v119, %v120
    %v122 = vrot.slane %v121, 1
    %v123 = vadd.f32 %v121, %v122
    %v124 = vmul.f32 %v52, %v107
    %v125 = vmul.f32 %v53, %v108
    %v126 = vmul.f32 %v54, %v109
    %v127 = vmul.f32 %v55, %v110
    %v128 = vadd.f32 %v124, %v125
    %v129 = vadd.f32 %v128, %v126
    %v130 = vadd.f32 %v129, %v127
    %v131 = vrot.slane %v130, 4
    %v132 = vadd.f32 %v130, %v131
    %v133 = vrot.slane %v132, 2
    %v134 = vadd.f32 %v132, %v133
    %v135 = vrot.slane %v134, 1
    %v136 = vadd.f32 %v134, %v135
    %v137 = vmul.f32 %v57, %v107
    %v138 = vmul.f32 %v58, %v108
    %v139 = vmul.f32 %v59, %v109
    %v140 = vmul.f32 %v60, %v110
    %v141 = vadd.f32 %v137, %v138
    %v142 = vadd.f32 %v141, %v139
    %v143 = vadd.f32 %v142, %v140
    %v144 = vrot.slane %v143, 4
    %v145 = vadd.f32 %v143, %v144
    %v146 = vrot.slane %v145, 2
    %v147 = vadd.f32 %v145, %v146
    %v148 = vrot.slane %v147, 1
    %v149 = vadd.f32 %v147, %v148
    %v150 = vadd.f32 %v107, %v108
    %v151 = vadd.f32 %v150, %v109
    %v152 = vadd.f32 %v151, %v110
    %v153 = vrot.slane %v152, 4
    %v154 = vadd.f32 %v152, %v153
    %v155 = vrot.slane %v154, 2
    %v156 = vadd.f32 %v154, %v155
    %v157 = vrot.slane %v156, 1
    %v158 = vadd.f32 %v156, %v157
    %vm159 = vcmask 1040384
    %v160 = vsel %vm159, %v123, %v136
    %vm161 = vcmask 1041408
    %v162 = vsel %vm161, %v160, %v149
    %vm163 = vcmask 1042432
    %v164 = vsel %vm163, %v162, %v158
    %p165 = scmp.eq.s32.totalorder 0, 0
    // Predicated region
    $region18: #{tpu_custom_call.1} parent=1 // pred_check
      %p166 = pneg %p165
    $region19: #{tpu_custom_call.1} parent=1 // pred_check_branch
      %168 = sbr.rel (%p166) target = $region21
    $region20: #{tpu_custom_call.1} parent=1 // pred_region
      %169 = vst [vmem:[#allocation7] sm:$0xf] %v164
    $region21: #{tpu_custom_call.1} parent=1 // pred_fallthru
      _
    %p170 = scmp.ne.s32.totalorder 0, 0
    // Predicated region
    $region22: #{tpu_custom_call.1} parent=1 // pred_check
      %p171 = pneg %p170
    $region23: #{tpu_custom_call.1} parent=1 // pred_check_branch
      %173 = sbr.rel (%p171) target = $region25
    $region24: #{tpu_custom_call.1} parent=1 // pred_region
      %v174 = vld [vmem:[#allocation7] sm:$0xf]
      %v175 = vadd.f32 %v174, %v164
      %176 = vst [vmem:[#allocation7] sm:$0xf] %v175
    $region25: #{tpu_custom_call.1} parent=1 // pred_fallthru
      _
    // Predicated region
    $region26: #{tpu_custom_call.1} parent=1 // pred_check
      _
    $region27: #{tpu_custom_call.1} parent=1 // pred_check_branch
      %178 = sbr.rel (0) target = $region29
    $region28: #{tpu_custom_call.1} parent=1 // pred_region
      %180 = vsyncadd [#allocation4], 0
      %s182 = sshll.u32 [#allocation7], 4
      %s183 = int_to_ptr.vmem [resolvable:$true] %s182
      %s184 = sshll.u32 %s2, 4
      %s185 = int_to_ptr.hbm [resolvable:$true] %s184
      %187 = dma.vmem_to_hbm [thread:$0]  %s183, 64, %s185, [#allocation4]
    $region29: #{tpu_custom_call.1} parent=1 // pred_fallthru
      _
    // Predicated region
    $region30: #{tpu_custom_call.1} parent=1 // pred_check
      _
    $region31: #{tpu_custom_call.1} parent=1 // pred_check_branch
      %189 = sbr.rel (0) target = $region33
    $region32: #{tpu_custom_call.1} parent=1 // pred_region
      %191 = dma.done [#allocation4], 64
    $region33: #{tpu_custom_call.1} parent=1 // pred_fallthru
      _
    %192 = vsyncpa [#allocation3], 1
    %193 = vsyncpa [#allocation4], 1
    %194 = vsyncpa [#allocation5], 1

</llo_original>
